<compile_context>
chip_gen: v7x
topology: tpu7x:2x2x1
jax: 0.10.0
libtpu: 0.0.40
codegen_flags: <defaults>
</compile_context>

<pallas_src>
import functools

import jax
import jax.numpy as jnp
from jax.experimental import pallas as pl
from jax.experimental.pallas import tpu as pltpu


def _round_up(n, m):
    return ((n + m - 1) // m) * m


def _mlp_residual_softmax_kernel(
    x_ref, w1_ref, b1_ref, w2_ref, b2_ref, w3_ref, b3_ref, w4_ref, b4_ref, o_ref
):
    """softmax(x + MLP(x)) over one batch tile; channels on sublanes, batch on lanes.

    x_ref/o_ref: (C, TB) f32    w*: (out, in) bf16
    b1..b3: (out, 1) bf16 (v6e/v7x) or f32 (v5e)    b4: (out, 1) f32
    """
    x = x_ref[...].astype(jnp.float32)                       # (C, TB) f32
    x_bf = x.astype(jnp.bfloat16)

    def hidden_layer(w_ref, b_ref, a_bf16):
        # bf16 MXU matmul, f32 accumulate; bias+ReLU in the bias dtype (bf16 on v6e/v7x)
        h = jnp.dot(w_ref[...], a_bf16, preferred_element_type=jnp.float32)
        h = h.astype(b_ref.dtype) + b_ref[...]
        return jnp.maximum(h, 0.0).astype(jnp.bfloat16)

    h = hidden_layer(w1_ref, b1_ref, x_bf)                   # (64,  TB)
    h = hidden_layer(w2_ref, b2_ref, h)                      # (128, TB)
    h = hidden_layer(w3_ref, b3_ref, h)                      # (64,  TB)

    # layer 4 + residual (b4 folded into the residual add), all f32
    y = jnp.dot(w4_ref[...], h, preferred_element_type=jnp.float32) + (x + b4_ref[...])

    # softmax over channels (axis 0 here == dim=1 in the PyTorch module)
    y = y - jnp.max(y, axis=0, keepdims=True)
    e = jnp.exp(y)
    inv = pl.reciprocal(jnp.sum(e, axis=0, keepdims=True), approx=False)
    o_ref[...] = (e * inv).astype(o_ref.dtype)


def _default_hidden_dtype():
    """bf16 elementwise only where the VPU has native bf16 (v6e / v7x)."""
    try:
        kind = jax.devices()[0].device_kind.lower()
    except Exception:
        return jnp.float32
    return jnp.bfloat16 if ("v6" in kind or "v7" in kind) else jnp.float32


def prepare_params(params, hidden_dtype=None):
    """One-time (outside jit) quantization: w* -> bf16, b1..b3 -> hidden dtype, b4 stays f32."""
    if hidden_dtype is None:
        hidden_dtype = _default_hidden_dtype()
    prepped = {f"w{i}": params[f"w{i}"].astype(jnp.bfloat16) for i in range(1, 5)}
    for i in range(1, 4):
        prepped[f"b{i}"] = params[f"b{i}"].astype(hidden_dtype)
    prepped["b4"] = params["b4"].astype(jnp.float32)
    return prepped


@functools.partial(jax.jit, static_argnames=("block_n",))
def residual_color_cnn_cb(xt, prepped, *, block_n=8192):
    """Lane-dense entry point: xt is (C, B) f32, returns (C, B) f32 probabilities."""
    C, B = xt.shape

    # Big tile to amortize per-grid-step overhead and per-tile weight loads, but capped so the
    # "parallel" grid keeps >= 2 steps whenever B > 128 (v7x megacore).  min(..., B) keeps the
    # lane block either a multiple of 128 or equal to the full dim (BlockSpec constraint).
    block = min(_round_up(block_n, 128), _round_up(pl.cdiv(B, 2), 128), B)
    grid = (pl.cdiv(B, block),)

    w1, w2, w3, w4 = (prepped[f"w{i}"] for i in range(1, 5))
    b1, b2, b3, b4 = (prepped[f"b{i}"] for i in range(1, 5))

    def full_spec(a):
        # small weight/bias arrays fully resident in VMEM every grid step
        return pl.BlockSpec(a.shape, lambda i: (0, 0))

    h1, h2 = w1.shape[0], w2.shape[0]
    flops = 2 * B * (C * h1 + h1 * h2 + h2 * h1 + h1 * C)
    weight_bytes = sum(int(v.size) * v.dtype.itemsize for v in prepped.values())
    cost = pl.CostEstimate(
        flops=flops,
        transcendentals=(C + 1) * B,                 # exp per channel + reciprocal per column
        bytes_accessed=2 * B * C * 4 + weight_bytes,
    )

    return pl.pallas_call(
        _mlp_residual_softmax_kernel,
        out_shape=jax.ShapeDtypeStruct((C, B), xt.dtype),
        grid_spec=pltpu.PrefetchScalarGridSpec(
            num_scalar_prefetch=0,
            grid=grid,
            in_specs=[
                pl.BlockSpec((C, block), lambda i: (0, i)),   # x tile (batch on lanes)
                full_spec(w1), full_spec(b1),
                full_spec(w2), full_spec(b2),
                full_spec(w3), full_spec(b3),
                full_spec(w4), full_spec(b4),
            ],
            out_specs=pl.BlockSpec((C, block), lambda i: (0, i)),
        ),
        compiler_params=pltpu.CompilerParams(dimension_semantics=("parallel",)),
        cost_estimate=cost,
    )(xt, w1, b1, w2, b2, w3, b3, w4, b4)


@functools.partial(jax.jit, static_argnames=("block_n",))
def residual_color_cnn(x, prepped, *, block_n=8192):
    """PyTorch-layout entry point: x is (B, C) f32, returns (B, C) f32 (rows sum to 1)."""
    return residual_color_cnn_cb(x.T, prepped, block_n=block_n).T


def init_params(key, channels=3):
    """PyTorch nn.Linear default init (uniform +/- 1/sqrt(fan_in)); w (out,in), b (out,1), f32."""
    dims = [(channels, 64), (64, 128), (128, 64), (64, channels)]
    params = {}
    for idx, (fan_in, fan_out) in enumerate(dims, start=1):
        key, kw, kb = jax.random.split(key, 3)
        bound = 1.0 / jnp.sqrt(float(fan_in))
        params[f"w{idx}"] = jax.random.uniform(kw, (fan_out, fan_in), jnp.float32, -bound, bound)
        params[f"b{idx}"] = jax.random.uniform(kb, (fan_out, 1), jnp.float32, -bound, bound)
    return params


def reference_forward(x, params):
    """Pure-f32 JAX reference matching the PyTorch forward exactly."""
    h = jnp.maximum(x @ params["w1"].T + params["b1"].T, 0.0)
    h = jnp.maximum(h @ params["w2"].T + params["b2"].T, 0.0)
    h = jnp.maximum(h @ params["w3"].T + params["b3"].T, 0.0)
    y = x + (h @ params["w4"].T + params["b4"].T)
    return jax.nn.softmax(y, axis=1)


def reference_forward_bf16(x, params):
    """Reference mirroring the kernel's bf16 matmul operands (f32 accumulate)."""
    def qdot(a, w):
        return jnp.dot(a.astype(jnp.bfloat16), w.astype(jnp.bfloat16).T,
                       preferred_element_type=jnp.float32)
    h = jnp.maximum(qdot(x, params["w1"]) + params["b1"].T, 0.0)
    h = jnp.maximum(qdot(h, params["w2"]) + params["b2"].T, 0.0)
    h = jnp.maximum(qdot(h, params["w3"]) + params["b3"].T, 0.0)
    y = x + (qdot(h, params["w4"]) + params["b4"].T)
    return jax.nn.softmax(y, axis=1)


if __name__ == "__main__":
    key = jax.random.PRNGKey(0)
    k_param, k_x = jax.random.split(key)

    channels = 3
    batch = 256            # small; block=128 -> 2 "parallel" grid steps

    params = init_params(k_param, channels=channels)
    prepped = prepare_params(params)   # one-time bf16 quantization, outside jit

    # normalized non-negative RGB rows (sum to 1), as the module's docstring expects
    raw = jax.random.uniform(k_x, (batch, channels), jnp.float32, 0.0, 1.0)
    x = raw / jnp.sum(raw, axis=1, keepdims=True)

    out = jax.block_until_ready(residual_color_cnn(x, prepped))

    ref_q = reference_forward_bf16(x, params)   # matches kernel's bf16 matmul operands
    ref_f = reference_forward(x, params)        # pure-f32 module semantics

    assert out.shape == (batch, channels)
    assert jnp.allclose(out, ref_q, atol=1e-2), float(jnp.max(jnp.abs(out - ref_q)))
    assert jnp.allclose(out, ref_f, atol=5e-2)  # semantics preserved up to bf16 quantization
    assert jnp.allclose(jnp.sum(out, axis=1), 1.0, atol=1e-4)   # exact-reciprocal softmax
    assert bool(jnp.all(out >= 0.0))

    # ragged batch: exercises the masked OOB tail (no jnp.pad anywhere)
    xs = x[:37]
    outs = jax.block_until_ready(residual_color_cnn(xs, prepped))
    assert outs.shape == (37, channels)
    assert jnp.allclose(outs, ref_q[:37], atol=1e-2)

    # larger batch: exercises a multi-step grid with bigger tiles
    xb = jnp.tile(x, (8, 1))                    # (2048, 3)
    outb = jax.block_until_ready(residual_color_cnn(xb, prepped))
    assert outb.shape == (2048, channels)
    assert jnp.allclose(outb[:batch], ref_q, atol=1e-2)

    print("KERNEL_OK")
</pallas_src>

<mosaic_0001>
module attributes {stable_mosaic.version = 11 : i64} {
  func.func @_mlp_residual_softmax_kernel(%arg0: i32, %arg1: memref<3x128xf32, #tpu.memory_space<vmem>>, %arg2: memref<64x3xbf16, #tpu.memory_space<vmem>>, %arg3: memref<64x1xf32, #tpu.memory_space<vmem>>, %arg4: memref<128x64xbf16, #tpu.memory_space<vmem>>, %arg5: memref<128x1xf32, #tpu.memory_space<vmem>>, %arg6: memref<64x128xbf16, #tpu.memory_space<vmem>>, %arg7: memref<64x1xf32, #tpu.memory_space<vmem>>, %arg8: memref<3x64xbf16, #tpu.memory_space<vmem>>, %arg9: memref<3x1xf32, #tpu.memory_space<vmem>>, %arg10: memref<3x128xf32, #tpu.memory_space<vmem>>) attributes {dimension_semantics = [#tpu.dimension_semantics<parallel>], iteration_bounds = array<i64: 2>, scalar_prefetch = 0 : i64, scratch_operands = 0 : i64, tpu.core_type = #tpu.core_type<tc>, window_params = [{transform_indices = @transform_0, window_bounds = array<i64: 3, 128>}, {pipeline_mode = #tpu.pipeline_mode<synchronous>, transform_indices = @transform_1, window_bounds = array<i64: 64, 3>}, {pipeline_mode = #tpu.pipeline_mode<synchronous>, transform_indices = @transform_2, window_bounds = array<i64: 64, 1>}, {pipeline_mode = #tpu.pipeline_mode<synchronous>, transform_indices = @transform_3, window_bounds = array<i64: 128, 64>}, {pipeline_mode = #tpu.pipeline_mode<synchronous>, transform_indices = @transform_4, window_bounds = array<i64: 128, 1>}, {pipeline_mode = #tpu.pipeline_mode<synchronous>, transform_indices = @transform_5, window_bounds = array<i64: 64, 128>}, {pipeline_mode = #tpu.pipeline_mode<synchronous>, transform_indices = @transform_6, window_bounds = array<i64: 64, 1>}, {pipeline_mode = #tpu.pipeline_mode<synchronous>, transform_indices = @transform_7, window_bounds = array<i64: 3, 64>}, {pipeline_mode = #tpu.pipeline_mode<synchronous>, transform_indices = @transform_8, window_bounds = array<i64: 3, 1>}, {transform_indices = @transform_9, window_bounds = array<i64: 3, 128>}]} {
    %c0 = arith.constant 0 : index
    %c0_0 = arith.constant 0 : index
    %0 = vector.load %arg1[%c0, %c0_0] : memref<3x128xf32, #tpu.memory_space<vmem>>, vector<3x128xf32>
    %1 = arith.truncf %0 : vector<3x128xf32> to vector<3x128xbf16>
    %c0_1 = arith.constant 0 : index
    %c0_2 = arith.constant 0 : index
    %2 = vector.load %arg2[%c0_1, %c0_2] : memref<64x3xbf16, #tpu.memory_space<vmem>>, vector<64x3xbf16>
    %cst = arith.constant dense<0.000000e+00> : vector<64x128xf32>
    %3 = tpu.matmul %2, %1, %cst {dimension_numbers = #tpu.dot_dimension_numbers<[1], [0], [0], [1], [0, 0, 1, 1], [], []>} : vector<64x3xbf16>, vector<3x128xbf16>, vector<64x128xf32> -> vector<64x128xf32>
    %c0_3 = arith.constant 0 : index
    %c0_4 = arith.constant 0 : index
    %4 = vector.load %arg3[%c0_3, %c0_4] : memref<64x1xf32, #tpu.memory_space<vmem>>, vector<64x1xf32>
    %5 = vector.broadcast %4 : vector<64x1xf32> to vector<64x128xf32>
    %6 = arith.addf %3, %5 : vector<64x128xf32>
    %cst_5 = arith.constant 0.000000e+00 : f32
    %7 = vector.broadcast %cst_5 : f32 to vector<64x128xf32>
    %8 = arith.maximumf %6, %7 : vector<64x128xf32>
    %9 = arith.truncf %8 : vector<64x128xf32> to vector<64x128xbf16>
    %c0_6 = arith.constant 0 : index
    %c0_7 = arith.constant 0 : index
    %10 = vector.load %arg4[%c0_6, %c0_7] : memref<128x64xbf16, #tpu.memory_space<vmem>>, vector<128x64xbf16>
    %cst_8 = arith.constant dense<0.000000e+00> : vector<128x128xf32>
    %11 = tpu.matmul %10, %9, %cst_8 {dimension_numbers = #tpu.dot_dimension_numbers<[1], [0], [0], [1], [0, 0, 1, 1], [], []>} : vector<128x64xbf16>, vector<64x128xbf16>, vector<128x128xf32> -> vector<128x128xf32>
    %c0_9 = arith.constant 0 : index
    %c0_10 = arith.constant 0 : index
    %12 = vector.load %arg5[%c0_9, %c0_10] : memref<128x1xf32, #tpu.memory_space<vmem>>, vector<128x1xf32>
    %13 = vector.broadcast %12 : vector<128x1xf32> to vector<128x128xf32>
    %14 = arith.addf %11, %13 : vector<128x128xf32>
    %cst_11 = arith.constant 0.000000e+00 : f32
    %15 = vector.broadcast %cst_11 : f32 to vector<128x128xf32>
    %16 = arith.maximumf %14, %15 : vector<128x128xf32>
    %17 = arith.truncf %16 : vector<128x128xf32> to vector<128x128xbf16>
    %c0_12 = arith.constant 0 : index
    %c0_13 = arith.constant 0 : index
    %18 = vector.load %arg6[%c0_12, %c0_13] : memref<64x128xbf16, #tpu.memory_space<vmem>>, vector<64x128xbf16>
    %cst_14 = arith.constant dense<0.000000e+00> : vector<64x128xf32>
    %19 = tpu.matmul %18, %17, %cst_14 {dimension_numbers = #tpu.dot_dimension_numbers<[1], [0], [0], [1], [0, 0, 1, 1], [], []>} : vector<64x128xbf16>, vector<128x128xbf16>, vector<64x128xf32> -> vector<64x128xf32>
    %c0_15 = arith.constant 0 : index
    %c0_16 = arith.constant 0 : index
    %20 = vector.load %arg7[%c0_15, %c0_16] : memref<64x1xf32, #tpu.memory_space<vmem>>, vector<64x1xf32>
    %21 = vector.broadcast %20 : vector<64x1xf32> to vector<64x128xf32>
    %22 = arith.addf %19, %21 : vector<64x128xf32>
    %cst_17 = arith.constant 0.000000e+00 : f32
    %23 = vector.broadcast %cst_17 : f32 to vector<64x128xf32>
    %24 = arith.maximumf %22, %23 : vector<64x128xf32>
    %25 = arith.truncf %24 : vector<64x128xf32> to vector<64x128xbf16>
    %c0_18 = arith.constant 0 : index
    %c0_19 = arith.constant 0 : index
    %26 = vector.load %arg8[%c0_18, %c0_19] : memref<3x64xbf16, #tpu.memory_space<vmem>>, vector<3x64xbf16>
    %cst_20 = arith.constant dense<0.000000e+00> : vector<3x128xf32>
    %27 = tpu.matmul %26, %25, %cst_20 {dimension_numbers = #tpu.dot_dimension_numbers<[1], [0], [0], [1], [0, 0, 1, 1], [], []>} : vector<3x64xbf16>, vector<64x128xbf16>, vector<3x128xf32> -> vector<3x128xf32>
    %c0_21 = arith.constant 0 : index
    %c0_22 = arith.constant 0 : index
    %28 = vector.load %arg9[%c0_21, %c0_22] : memref<3x1xf32, #tpu.memory_space<vmem>>, vector<3x1xf32>
    %29 = vector.broadcast %28 : vector<3x1xf32> to vector<3x128xf32>
    %30 = arith.addf %0, %29 : vector<3x128xf32>
    %31 = arith.addf %27, %30 : vector<3x128xf32>
    %cst_23 = arith.constant dense<0xFF800000> : vector<128xf32>
    %32 = vector.multi_reduction <maximumf>, %31, %cst_23 [0] : vector<3x128xf32> to vector<128xf32>
    %33 = vector.shape_cast %32 : vector<128xf32> to vector<1x128xf32>
    %34 = vector.broadcast %33 : vector<1x128xf32> to vector<3x128xf32>
    %35 = arith.subf %31, %34 : vector<3x128xf32>
    %36 = math.exp %35 : vector<3x128xf32>
    %cst_24 = arith.constant dense<0.000000e+00> : vector<128xf32>
    %37 = vector.multi_reduction <add>, %36, %cst_24 [0] : vector<3x128xf32> to vector<128xf32>
    %38 = vector.shape_cast %37 : vector<128xf32> to vector<1x128xf32>
    %39 = tpu.reciprocal %38 : vector<1x128xf32> -> vector<1x128xf32>
    %40 = vector.broadcast %39 : vector<1x128xf32> to vector<3x128xf32>
    %41 = arith.mulf %36, %40 : vector<3x128xf32>
    %c0_25 = arith.constant 0 : index
    %c0_26 = arith.constant 0 : index
    %42 = vector.load %arg10[%c0_25, %c0_26] : memref<3x128xf32, #tpu.memory_space<vmem>>, vector<3x128xf32>
    tpu.vector_store %arg10[%c0_25, %c0_26], %41 {strides = array<i32>} : memref<3x128xf32, #tpu.memory_space<vmem>>, vector<3x128xf32>,
    return
  }
  func.func @transform_0(%arg0: i32) -> (i32, i32) {
    %c0_i32 = arith.constant 0 : i32
    %c0_i32_0 = arith.constant 0 : i32
    return %c0_i32, %arg0 : i32, i32
  }
  func.func @transform_1(%arg0: i32) -> (i32, i32) {
    %c0_i32 = arith.constant 0 : i32
    %c0_i32_0 = arith.constant 0 : i32
    %c0_i32_1 = arith.constant 0 : i32
    return %c0_i32, %c0_i32_0 : i32, i32
  }
  func.func @transform_2(%arg0: i32) -> (i32, i32) {
    %c0_i32 = arith.constant 0 : i32
    %c0_i32_0 = arith.constant 0 : i32
    %c0_i32_1 = arith.constant 0 : i32
    return %c0_i32, %c0_i32_0 : i32, i32
  }
  func.func @transform_3(%arg0: i32) -> (i32, i32) {
    %c0_i32 = arith.constant 0 : i32
    %c0_i32_0 = arith.constant 0 : i32
    %c0_i32_1 = arith.constant 0 : i32
    return %c0_i32, %c0_i32_0 : i32, i32
  }
  func.func @transform_4(%arg0: i32) -> (i32, i32) {
    %c0_i32 = arith.constant 0 : i32
    %c0_i32_0 = arith.constant 0 : i32
    %c0_i32_1 = arith.constant 0 : i32
    return %c0_i32, %c0_i32_0 : i32, i32
  }
  func.func @transform_5(%arg0: i32) -> (i32, i32) {
    %c0_i32 = arith.constant 0 : i32
    %c0_i32_0 = arith.constant 0 : i32
    %c0_i32_1 = arith.constant 0 : i32
    return %c0_i32, %c0_i32_0 : i32, i32
  }
  func.func @transform_6(%arg0: i32) -> (i32, i32) {
    %c0_i32 = arith.constant 0 : i32
    %c0_i32_0 = arith.constant 0 : i32
    %c0_i32_1 = arith.constant 0 : i32
    return %c0_i32, %c0_i32_0 : i32, i32
  }
  func.func @transform_7(%arg0: i32) -> (i32, i32) {
    %c0_i32 = arith.constant 0 : i32
    %c0_i32_0 = arith.constant 0 : i32
    %c0_i32_1 = arith.constant 0 : i32
    return %c0_i32, %c0_i32_0 : i32, i32
  }
  func.func @transform_8(%arg0: i32) -> (i32, i32) {
    %c0_i32 = arith.constant 0 : i32
    %c0_i32_0 = arith.constant 0 : i32
    %c0_i32_1 = arith.constant 0 : i32
    return %c0_i32, %c0_i32_0 : i32, i32
  }
  func.func @transform_9(%arg0: i32) -> (i32, i32) {
    %c0_i32 = arith.constant 0 : i32
    %c0_i32_0 = arith.constant 0 : i32
    return %c0_i32, %arg0 : i32, i32
  }
}

</mosaic_0001>

<llo_original>
// kernel: residual_color_cnn_cb.1
$region0: #{residual_color_cnn_cb.1}
  #allocation0 [shape = 'u32[]', space=smem, size = 0x4, offset = 0x4, fixed_abs, tag = 'smem constant byte address 0x4 - core index']
  #allocation1 [shape = 'u32[144,128]{1,0:T(1,128)}', space=vmem, size = 0x12000, scoped, tag = 'internal scratch']
  %s0 = inlined_call_operand.vmem [shape: f32[3,256], index: 0, kind: input, shape index: {}]
  %s1 = inlined_call_operand.vmem [shape: bf16[64,3], index: 1, kind: input, shape index: {}]
  %s2 = inlined_call_operand.vmem [shape: f32[64,1], index: 2, kind: input, shape index: {}]
  %s3 = inlined_call_operand.vmem [shape: bf16[128,64], index: 3, kind: input, shape index: {}]
  %s4 = inlined_call_operand.vmem [shape: f32[128,1], index: 4, kind: input, shape index: {}]
  %s5 = inlined_call_operand.vmem [shape: bf16[64,128], index: 5, kind: input, shape index: {}]
  %s6 = inlined_call_operand.vmem [shape: f32[64,1], index: 6, kind: input, shape index: {}]
  %s7 = inlined_call_operand.vmem [shape: bf16[3,64], index: 7, kind: input, shape index: {}]
  %s8 = inlined_call_operand.vmem [shape: f32[3,1], index: 8, kind: input, shape index: {}]
  %s9 = inlined_call_operand.hbm [shape: f32[3,256], index: 9, kind: output, shape index: {}]
  %s10 = sld [smem:[#allocation0]]
  $region69: #{residual_color_cnn_cb.1} parent=0
    _
  %s12 = ssub.s32 1, %s10
  %s13 = scalar_select 0, %s12, %s10
  $region1: #{residual_color_cnn_cb.1} parent=0
    #allocation2 [shape = 'u8[4096]{0}', space=vmem, size = 0x1000, scoped, tag = 'output window, operand 0']
    #allocation3 [shape = 's32[2]{0}', space=sflag, size = 0x8, scoped, tag = 'scoped memory for residual_color_cnn_cb.1']
    %14 = vsyncpa [#allocation3], 0
    %s15 = scalar_lea.sflag [#allocation3], 1
    %16 = vsyncpa %s15, 0
    loop: start=0, step=1, limit=4
    $region2: #{residual_color_cnn_cb.1} parent=1 // loop_pre_header
      _
    $region3: #{residual_color_cnn_cb.1} parent=1 // loop_header
      %s18 = sphi 0, %s22
      %p19 = scmp.ge.s32.totalorder %s18, 4
      %s28 = sphi 0, %s30
      %s31 = sphi 0, %s28
      %s32 = sphi 0, %s31
      %s48 = sphi 0, %s32
      %s52 = sphi 0, %s52
      %s54 = sphi 0, %s52
      %s55 = sphi 0, %s54
      %s69 = sphi 0, %s55
      %s73 = sphi 0, %s73
      %s75 = sphi 0, %s73
      %s76 = sphi 0, %s75
      %s90 = sphi 0, %s76
      %s94 = sphi 0, %s94
      %s96 = sphi 0, %s94
      %s97 = sphi 0, %s96
      %s111 = sphi 0, %s97
      %s115 = sphi 0, %s115
      %s117 = sphi 0, %s115
      %s118 = sphi 0, %s117
      %s132 = sphi 0, %s118
      %s136 = sphi 0, %s136
      %s138 = sphi 0, %s136
      %s139 = sphi 0, %s138
      %s153 = sphi 0, %s139
      %s157 = sphi 0, %s157
      %s159 = sphi 0, %s157
      %s160 = sphi 0, %s159
      %s174 = sphi 0, %s160
      %s178 = sphi 0, %s178
      %s180 = sphi 0, %s178
      %s181 = sphi 0, %s180
      %s195 = sphi 0, %s181
      %s199 = sphi 0, %s199
      %s201 = sphi 0, %s199
      %s202 = sphi 0, %s201
      %s216 = sphi 0, %s202
      %s222 = sphi 0, %s224
      %s225 = sphi 0, %s222
      %s226 = sphi 0, %s225
      %s242 = sphi 0, %s226
    $region4: #{residual_color_cnn_cb.1} parent=1 // loop_header_branch
      %21 = sbr.rel (%p19) target = $region8
    $region5: #{residual_color_cnn_cb.1} parent=1 // loop_body
      %s23 = ssub.s32 %s18, 1
      %s24 = ssub.s32 %s18, 2
      %s25 = sadd.s32 %s18, 1
      %s26 = ssub.s32 %s18, %s25
      %p27 = scmp.eq.s32.totalorder %s26, 0
      %s29 = sadd.s32 %s28, 1
      %s30 = scalar_select %p27, %s28, %s29
      %p33 = pneg %p27
      %p34 = scmp.eq.s32.totalorder %s18, 1
      %p35 = por %p33, %p34
      %p36 = scmp.ne.s32.totalorder %s28, %s31
      %p37 = scmp.eq.s32.totalorder %s18, 0
      %p38 = por %p36, %p37
      %p39 = scmp.ne.s32.totalorder %s28, %s31
      %p40 = scmp.eq.s32.totalorder %s23, 1
      %p41 = por %p39, %p40
      %p42 = scmp.ne.s32.totalorder %s31, %s32
      %p43 = scmp.eq.s32.totalorder %s23, 0
      %p44 = por %p42, %p43
      %p45 = scmp.ne.s32.totalorder %s31, %s32
      %p46 = scmp.eq.s32.totalorder %s24, 1
      %p47 = por %p45, %p46
      %p49 = scmp.ne.s32.totalorder %s32, %s48
      %p50 = scmp.eq.s32.totalorder %s24, 0
      %p51 = por %p49, %p50
      %s53 = sadd.s32 %s52, 1
      %p56 = scmp.eq.s32.totalorder %s18, 1
      %p57 = scmp.ne.s32.totalorder %s52, %s54
      %p58 = scmp.eq.s32.totalorder %s18, 0
      %p59 = por %p57, %p58
      %p60 = scmp.ne.s32.totalorder %s52, %s54
      %p61 = scmp.eq.s32.totalorder %s23, 1
      %p62 = por %p60, %p61
      %p63 = scmp.ne.s32.totalorder %s54, %s55
      %p64 = scmp.eq.s32.totalorder %s23, 0
      %p65 = por %p63, %p64
      %p66 = scmp.ne.s32.totalorder %s54, %s55
      %p67 = scmp.eq.s32.totalorder %s24, 1
      %p68 = por %p66, %p67
      %p70 = scmp.ne.s32.totalorder %s55, %s69
      %p71 = scmp.eq.s32.totalorder %s24, 0
      %p72 = por %p70, %p71
      %s74 = sadd.s32 %s73, 1
      %p77 = scmp.eq.s32.totalorder %s18, 1
      %p78 = scmp.ne.s32.totalorder %s73, %s75
      %p79 = scmp.eq.s32.totalorder %s18, 0
      %p80 = por %p78, %p79
      %p81 = scmp.ne.s32.totalorder %s73, %s75
      %p82 = scmp.eq.s32.totalorder %s23, 1
      %p83 = por %p81, %p82
      %p84 = scmp.ne.s32.totalorder %s75, %s76
      %p85 = scmp.eq.s32.totalorder %s23, 0
      %p86 = por %p84, %p85
      %p87 = scmp.ne.s32.totalorder %s75, %s76
      %p88 = scmp.eq.s32.totalorder %s24, 1
      %p89 = por %p87, %p88
      %p91 = scmp.ne.s32.totalorder %s76, %s90
      %p92 = scmp.eq.s32.totalorder %s24, 0
      %p93 = por %p91, %p92
      %s95 = sadd.s32 %s94, 1
      %p98 = scmp.eq.s32.totalorder %s18, 1
      %p99 = scmp.ne.s32.totalorder %s94, %s96
      %p100 = scmp.eq.s32.totalorder %s18, 0
      %p101 = por %p99, %p100
      %p102 = scmp.ne.s32.totalorder %s94, %s96
      %p103 = scmp.eq.s32.totalorder %s23, 1
      %p104 = por %p102, %p103
      %p105 = scmp.ne.s32.totalorder %s96, %s97
      %p106 = scmp.eq.s32.totalorder %s23, 0
      %p107 = por %p105, %p106
      %p108 = scmp.ne.s32.totalorder %s96, %s97
      %p109 = scmp.eq.s32.totalorder %s24, 1
      %p110 = por %p108, %p109
      %p112 = scmp.ne.s32.totalorder %s97, %s111
      %p113 = scmp.eq.s32.totalorder %s24, 0
      %p114 = por %p112, %p113
      %s116 = sadd.s32 %s115, 1
      %p119 = scmp.eq.s32.totalorder %s18, 1
      %p120 = scmp.ne.s32.totalorder %s115, %s117
      %p121 = scmp.eq.s32.totalorder %s18, 0
      %p122 = por %p120, %p121
      %p123 = scmp.ne.s32.totalorder %s115, %s117
      %p124 = scmp.eq.s32.totalorder %s23, 1
      %p125 = por %p123, %p124
      %p126 = scmp.ne.s32.totalorder %s117, %s118
      %p127 = scmp.eq.s32.totalorder %s23, 0
      %p128 = por %p126, %p127
      %p129 = scmp.ne.s32.totalorder %s117, %s118
      %p130 = scmp.eq.s32.totalorder %s24, 1
      %p131 = por %p129, %p130
      %p133 = scmp.ne.s32.totalorder %s118, %s132
      %p134 = scmp.eq.s32.totalorder %s24, 0
      %p135 = por %p133, %p134
      %s137 = sadd.s32 %s136, 1
      %p140 = scmp.eq.s32.totalorder %s18, 1
      %p141 = scmp.ne.s32.totalorder %s136, %s138
      %p142 = scmp.eq.s32.totalorder %s18, 0
      %p143 = por %p141, %p142
      %p144 = scmp.ne.s32.totalorder %s136, %s138
      %p145 = scmp.eq.s32.totalorder %s23, 1
      %p146 = por %p144, %p145
      %p147 = scmp.ne.s32.totalorder %s138, %s139
      %p148 = scmp.eq.s32.totalorder %s23, 0
      %p149 = por %p147, %p148
      %p150 = scmp.ne.s32.totalorder %s138, %s139
      %p151 = scmp.eq.s32.totalorder %s24, 1
      %p152 = por %p150, %p151
      %p154 = scmp.ne.s32.totalorder %s139, %s153
      %p155 = scmp.eq.s32.totalorder %s24, 0
      %p156 = por %p154, %p155
      %s158 = sadd.s32 %s157, 1
      %p161 = scmp.eq.s32.totalorder %s18, 1
      %p162 = scmp.ne.s32.totalorder %s157, %s159
      %p163 = scmp.eq.s32.totalorder %s18, 0
      %p164 = por %p162, %p163
      %p165 = scmp.ne.s32.totalorder %s157, %s159
      %p166 = scmp.eq.s32.totalorder %s23, 1
      %p167 = por %p165, %p166
      %p168 = scmp.ne.s32.totalorder %s159, %s160
      %p169 = scmp.eq.s32.totalorder %s23, 0
      %p170 = por %p168, %p169
      %p171 = scmp.ne.s32.totalorder %s159, %s160
      %p172 = scmp.eq.s32.totalorder %s24, 1
      %p173 = por %p171, %p172
      %p175 = scmp.ne.s32.totalorder %s160, %s174
      %p176 = scmp.eq.s32.totalorder %s24, 0
      %p177 = por %p175, %p176
      %s179 = sadd.s32 %s178, 1
      %p182 = scmp.eq.s32.totalorder %s18, 1
      %p183 = scmp.ne.s32.totalorder %s178, %s180
      %p184 = scmp.eq.s32.totalorder %s18, 0
      %p185 = por %p183, %p184
      %p186 = scmp.ne.s32.totalorder %s178, %s180
      %p187 = scmp.eq.s32.totalorder %s23, 1
      %p188 = por %p186, %p187
      %p189 = scmp.ne.s32.totalorder %s180, %s181
      %p190 = scmp.eq.s32.totalorder %s23, 0
      %p191 = por %p189, %p190
      %p192 = scmp.ne.s32.totalorder %s180, %s181
      %p193 = scmp.eq.s32.totalorder %s24, 1
      %p194 = por %p192, %p193
      %p196 = scmp.ne.s32.totalorder %s181, %s195
      %p197 = scmp.eq.s32.totalorder %s24, 0
      %p198 = por %p196, %p197
      %s200 = sadd.s32 %s199, 1
      %p203 = scmp.eq.s32.totalorder %s18, 1
      %p204 = scmp.ne.s32.totalorder %s199, %s201
      %p205 = scmp.eq.s32.totalorder %s18, 0
      %p206 = por %p204, %p205
      %p207 = scmp.ne.s32.totalorder %s199, %s201
      %p208 = scmp.eq.s32.totalorder %s23, 1
      %p209 = por %p207, %p208
      %p210 = scmp.ne.s32.totalorder %s201, %s202
      %p211 = scmp.eq.s32.totalorder %s23, 0
      %p212 = por %p210, %p211
      %p213 = scmp.ne.s32.totalorder %s201, %s202
      %p214 = scmp.eq.s32.totalorder %s24, 1
      %p215 = por %p213, %p214
      %p217 = scmp.ne.s32.totalorder %s202, %s216
      %p218 = scmp.eq.s32.totalorder %s24, 0
      %p219 = por %p217, %p218
      %s220 = ssub.s32 %s18, %s25
      %p221 = scmp.eq.s32.totalorder %s220, 0
      %s223 = sadd.s32 %s222, 1
      %s224 = scalar_select %p221, %s222, %s223
      %p227 = pneg %p221
      %p228 = scmp.eq.s32.totalorder %s18, 1
      %p229 = por %p227, %p228
      %p230 = scmp.ne.s32.totalorder %s222, %s225
      %p231 = scmp.eq.s32.totalorder %s18, 0
      %p232 = por %p230, %p231
      %p233 = scmp.ne.s32.totalorder %s222, %s225
      %p234 = scmp.eq.s32.totalorder %s23, 1
      %p235 = por %p233, %p234
      %p236 = scmp.ne.s32.totalorder %s225, %s226
      %p237 = scmp.eq.s32.totalorder %s23, 0
      %p238 = por %p236, %p237
      %p239 = scmp.ne.s32.totalorder %s225, %s226
      %p240 = scmp.eq.s32.totalorder %s24, 1
      %p241 = por %p239, %p240
      %p243 = scmp.ne.s32.totalorder %s226, %s242
      %p244 = scmp.eq.s32.totalorder %s24, 0
      %p245 = por %p243, %p244
      %p246 = scmp.le.s32.totalorder 1, %s18
      %p247 = scmp.lt.s32.totalorder %s18, 3
      %p248 = pnand %p246, %p247
      %p249 = pneg %p248
      // Predicated region
      $region9: #{residual_color_cnn_cb.1} parent=5 // pred_check
        _
      $region10: #{residual_color_cnn_cb.1} parent=5 // pred_check_branch
        %251 = sbr.rel (%p248) target = $region12
      $region11: #{residual_color_cnn_cb.1} parent=5 // pred_region
        %s252 = ssub.s32 %s18, 1
        // Predicated region
        $region13: #{residual_color_cnn_cb.1} parent=11 // pred_check
          %p253 = pneg %p65
        $region14: #{residual_color_cnn_cb.1} parent=11 // pred_check_branch
          %255 = sbr.rel (%p253) target = $region16
        $region15: #{residual_color_cnn_cb.1} parent=11 // pred_region
          _
        $region16: #{residual_color_cnn_cb.1} parent=11 // pred_fallthru
          _
        // Predicated region
        $region17: #{residual_color_cnn_cb.1} parent=11 // pred_check
          %p256 = pneg %p86
        $region18: #{residual_color_cnn_cb.1} parent=11 // pred_check_branch
          %258 = sbr.rel (%p256) target = $region20
        $region19: #{residual_color_cnn_cb.1} parent=11 // pred_region
          _
        $region20: #{residual_color_cnn_cb.1} parent=11 // pred_fallthru
          _
        // Predicated region
        $region21: #{residual_color_cnn_cb.1} parent=11 // pred_check
          %p259 = pneg %p107
        $region22: #{residual_color_cnn_cb.1} parent=11 // pred_check_branch
          %261 = sbr.rel (%p259) target = $region24
        $region23: #{residual_color_cnn_cb.1} parent=11 // pred_region
          _
        $region24: #{residual_color_cnn_cb.1} parent=11 // pred_fallthru
          _
        // Predicated region
        $region25: #{residual_color_cnn_cb.1} parent=11 // pred_check
          %p262 = pneg %p128
        $region26: #{residual_color_cnn_cb.1} parent=11 // pred_check_branch
          %264 = sbr.rel (%p262) target = $region28
        $region27: #{residual_color_cnn_cb.1} parent=11 // pred_region
          _
        $region28: #{residual_color_cnn_cb.1} parent=11 // pred_fallthru
          _
        // Predicated region
        $region29: #{residual_color_cnn_cb.1} parent=11 // pred_check
          %p265 = pneg %p149
        $region30: #{residual_color_cnn_cb.1} parent=11 // pred_check_branch
          %267 = sbr.rel (%p265) target = $region32
        $region31: #{residual_color_cnn_cb.1} parent=11 // pred_region
          _
        $region32: #{residual_color_cnn_cb.1} parent=11 // pred_fallthru
          _
        // Predicated region
        $region33: #{residual_color_cnn_cb.1} parent=11 // pred_check
          %p268 = pneg %p170
        $region34: #{residual_color_cnn_cb.1} parent=11 // pred_check_branch
          %270 = sbr.rel (%p268) target = $region36
        $region35: #{residual_color_cnn_cb.1} parent=11 // pred_region
          _
        $region36: #{residual_color_cnn_cb.1} parent=11 // pred_fallthru
          _
        // Predicated region
        $region37: #{residual_color_cnn_cb.1} parent=11 // pred_check
          %p271 = pneg %p191
        $region38: #{residual_color_cnn_cb.1} parent=11 // pred_check_branch
          %273 = sbr.rel (%p271) target = $region40
        $region39: #{residual_color_cnn_cb.1} parent=11 // pred_region
          _
        $region40: #{residual_color_cnn_cb.1} parent=11 // pred_fallthru
          _
        // Predicated region
        $region41: #{residual_color_cnn_cb.1} parent=11 // pred_check
          %p274 = pneg %p212
        $region42: #{residual_color_cnn_cb.1} parent=11 // pred_check_branch
          %276 = sbr.rel (%p274) target = $region44
        $region43: #{residual_color_cnn_cb.1} parent=11 // pred_region
          _
        $region44: #{residual_color_cnn_cb.1} parent=11 // pred_fallthru
          _
      $region12: #{residual_color_cnn_cb.1} parent=5 // pred_fallthru
        _
      %p277 = scmp.lt.s32.totalorder %s18, 2
      // Predicated region
      $region45: #{residual_color_cnn_cb.1} parent=5 // pred_check
        %p278 = pneg %p277
      $region46: #{residual_color_cnn_cb.1} parent=5 // pred_check_branch
        %280 = sbr.rel (%p278) target = $region48
      $region47: #{residual_color_cnn_cb.1} parent=5 // pred_region
        // Predicated region
        $region49: #{residual_color_cnn_cb.1} parent=47 // pred_check
          %p281 = pneg %p38
        $region50: #{residual_color_cnn_cb.1} parent=47 // pred_check_branch
          %283 = sbr.rel (%p281) target = $region52
        $region51: #{residual_color_cnn_cb.1} parent=47 // pred_region
          %p284 = scmp.lt.s32.totalorder %s18, 1
          %s285 = scalar_select %p284, %s18, 1
          %s286 = smul.addr %s285, 4
          %s287 = scalar_lea.vmem %s0, %s286
        $region52: #{residual_color_cnn_cb.1} parent=47 // pred_fallthru
          _
      $region48: #{residual_color_cnn_cb.1} parent=5 // pred_fallthru
        _
      %p288 = scmp.le.s32.totalorder 1, %s18
      %p289 = scmp.lt.s32.totalorder %s18, 3
      %p290 = pnand %p288, %p289
      %p291 = pneg %p290
      // Predicated region
      $region53: #{residual_color_cnn_cb.1} parent=5 // pred_check
        _
      $region54: #{residual_color_cnn_cb.1} parent=5 // pred_check_branch
        %293 = sbr.rel (%p290) target = $region56
      $region55: #{residual_color_cnn_cb.1} parent=5 // pred_region
        %s294 = ssub.s32 %s18, 1
        %p295 = scmp.lt.s32.totalorder %s23, 1
        %s296 = scalar_select %p295, %s23, 1
        %s297 = smul.addr %s296, 4
        %s298 = scalar_lea.vmem %s0, %s297
        %p299 = pneg %p44
        %p300 = pneg %p41
        %p301 = pneg %p65
        %p302 = pneg %p62
        %p303 = pneg %p86
        %p304 = pneg %p83
        %p305 = pneg %p107
        %p306 = pneg %p104
        %p307 = pneg %p128
        %p308 = pneg %p125
        %p309 = pneg %p149
        %p310 = pneg %p146
        %p311 = pneg %p170
        %p312 = pneg %p167
        %p313 = pneg %p191
        %p314 = pneg %p188
        %p315 = pneg %p212
        %p316 = pneg %p209
        %p317 = pneg %p238
        %p318 = pneg %p235
        %s319 = sand.u32 %s225, 1
        %s320 = scalar_lea.sflag [#allocation3], %s319
        %s321 = sand.u32 %s225, 1
        %s322 = smul.addr %s321, 4
        %s323 = scalar_lea.vmem [#allocation2], %s322
        %p324 = scmp.lt.s32.totalorder %s23, 1
        %s325 = scalar_select %p324, %s23, 1
        %s326 = smul.addr %s325, 4
        %s327 = scalar_lea.vmem %s0, %s326
        %v329 = vld [vmem:[%s327] sm:$0x7]
        %v330 = vpack.c.bf16 %v329, %v329
        %v331 = vld [vmem:[%s1] sm:$0xf]
        %v332 = vld [vmem:[%s1 + $0x4] sm:$0xf]
        %v333 = vld [vmem:[%s1 + $0x8] sm:$0xf]
        %v334 = vld [vmem:[%s1 + $0xc] sm:$0xf]
        %v335 = vld [vmem:[%s1 + $0x10] sm:$0xf]
        %v336 = vld [vmem:[%s1 + $0x14] sm:$0xf]
        %v337 = vld [vmem:[%s1 + $0x18] sm:$0xf]
        %v338 = vld [vmem:[%s1 + $0x1c] sm:$0xf]
        %v339 = vld [vmem:[%s2] sm:$0xff]
        %v340 = vld [vmem:[%s2 + $0x8] sm:$0xff]
        %v341 = vld [vmem:[%s2 + $0x10] sm:$0xff]
        %v342 = vld [vmem:[%s2 + $0x18] sm:$0xff]
        %v343 = vld [vmem:[%s2 + $0x20] sm:$0xff]
        %v344 = vld [vmem:[%s2 + $0x28] sm:$0xff]
        %v345 = vld [vmem:[%s2 + $0x30] sm:$0xff]
        %v346 = vld [vmem:[%s2 + $0x38] sm:$0xff]
        %348 = vset.pattern.permute.xlu0 0
        %349 = vperm.xlu0 %348, %v339
        %v350 = vpop.permute.xlu0 %349
        %353 = vset.pattern.permute.xlu0 0
        %354 = vperm.xlu0 %353, %v340
        %v355 = vpop.permute.xlu0 %354
        %358 = vset.pattern.permute.xlu0 0
        %359 = vperm.xlu0 %358, %v341
        %v360 = vpop.permute.xlu0 %359
        %363 = vset.pattern.permute.xlu0 0
        %364 = vperm.xlu0 %363, %v342
        %v365 = vpop.permute.xlu0 %364
        %368 = vset.pattern.permute.xlu0 0
        %369 = vperm.xlu0 %368, %v343
        %v370 = vpop.permute.xlu0 %369
        %373 = vset.pattern.permute.xlu0 0
        %374 = vperm.xlu0 %373, %v344
        %v375 = vpop.permute.xlu0 %374
        %378 = vset.pattern.permute.xlu0 0
        %379 = vperm.xlu0 %378, %v345
        %v380 = vpop.permute.xlu0 %379
        %383 = vset.pattern.permute.xlu0 0
        %384 = vperm.xlu0 %383, %v346
        %v385 = vpop.permute.xlu0 %384
        %v395 = vunpack.c.l.b16 %v331
        %v396 = vunpack.c.l.b16 %v332
        %v397 = vunpack.c.l.b16 %v333
        %v398 = vunpack.c.l.b16 %v334
        %v399 = vunpack.c.l.b16 %v335
        %v400 = vunpack.c.l.b16 %v336
        %v401 = vunpack.c.l.b16 %v337
        %v402 = vunpack.c.l.b16 %v338
        %v403 = vpack.c.b16 %v396, %v395
        %v404 = vpack.c.b16 %v398, %v397
        %v405 = vpack.c.b16 %v400, %v399
        %v406 = vpack.c.b16 %v402, %v401
        %vm407 = vcmask 23552
        %v409 = vsel %vm407, %v403, 0
        %v412 = vsel %vm407, %v404, 0
        %v415 = vsel %vm407, %v405, 0
        %v418 = vsel %vm407, %v406, 0
        %vm420 = vcmask 1040384
        %vm421 = vcmask 1041408
        %v422 = vsel %vm420, 4294967295, 65535
        %v423 = vsel %vm421, %v422, 0
        %v425 = vand.u32 %v330, %v423
        %427 = vmatprep.subr.bf16.mxu0 0
        %428 = vmatpush1.bf16.msra.mxu0 %v425
        %429 = vmatprep.subr.bf16.mxu0 0
        %430 = vmatpush1.bf16.msra.mxu0 0
        %431 = vmatprep.subr.bf16.mxu0 0
        %432 = vmatpush1.bf16.msra.mxu0 0
        %433 = vmatprep.subr.bf16.mxu0 0
        %434 = vmatpush1.bf16.msra.mxu0 0
        %435 = vmatprep.subr.bf16.mxu0 0
        %436 = vmatpush1.bf16.msra.mxu0 0
        %437 = vmatprep.subr.bf16.mxu0 0
        %438 = vmatpush1.bf16.msra.mxu0 0
        %439 = vmatprep.subr.bf16.mxu0 0
        %440 = vmatpush1.bf16.msra.mxu0 0
        %441 = vmatprep.subr.bf16.mxu0 0
        %442 = vmatpush1.bf16.msra.mxu0 0
        %443 = vmatprep.subr.bf16.mxu0 0
        %444 = vmatpush1.bf16.msra.mxu0 0
        %445 = vmatprep.subr.bf16.mxu0 0
        %446 = vmatpush1.bf16.msra.mxu0 0
        %447 = vmatprep.subr.bf16.mxu0 0
        %448 = vmatpush1.bf16.msra.mxu0 0
        %449 = vmatprep.subr.bf16.mxu0 0
        %450 = vmatpush1.bf16.msra.mxu0 0
        %451 = vmatprep.subr.bf16.mxu0 0
        %452 = vmatpush1.bf16.msra.mxu0 0
        %453 = vmatprep.subr.bf16.mxu0 0
        %454 = vmatpush1.bf16.msra.mxu0 0
        %455 = vmatprep.subr.bf16.mxu0 0
        %456 = vmatpush1.bf16.msra.mxu0 0
        %457 = vmatprep.subr.bf16.mxu0 0
        %458 = vmatpush1.bf16.msra.mxu0 0
        %459 = vmatprep.mubr.bf16.mxu0 0
        %460 = vmatmul.mubr.bf16.gmra.mrb[0].mxu0 %v409
        %v461 = vpop.f32.mrb[0].mxu0
        %v462 = vadd.f32 %v350, %v461
        %v463 = vpop.f32.mrb[0].mxu0
        %v464 = vpop.f32.mrb[0].mxu0
        %v465 = vadd.f32 %v355, %v464
        %v466 = vpop.f32.mrb[0].mxu0
        %467 = vmatprep.mubr.bf16.mxu0 0
        %468 = vmatmul.mubr.bf16.gmra.mrb[0].mxu0 %v412
        %v469 = vpop.f32.mrb[0].mxu0
        %v470 = vadd.f32 %v360, %v469
        %v471 = vpop.f32.mrb[0].mxu0
        %v472 = vpop.f32.mrb[0].mxu0
        %v473 = vadd.f32 %v365, %v472
        %v474 = vpop.f32.mrb[0].mxu0
        %475 = vmatprep.mubr.bf16.mxu0 0
        %476 = vmatmul.mubr.bf16.gmra.mrb[0].mxu0 %v415
        %v477 = vpop.f32.mrb[0].mxu0
        %v478 = vadd.f32 %v370, %v477
        %v479 = vpop.f32.mrb[0].mxu0
        %v480 = vpop.f32.mrb[0].mxu0
        %v481 = vadd.f32 %v375, %v480
        %v482 = vpop.f32.mrb[0].mxu0
        %483 = vmatprep.mubr.bf16.mxu0 0
        %484 = vmatmul.mubr.bf16.gmra.mrb[0].mxu0 %v418
        %v485 = vpop.f32.mrb[0].mxu0
        %v486 = vadd.f32 %v380, %v485
        %v487 = vpop.f32.mrb[0].mxu0
        %v488 = vpop.f32.mrb[0].mxu0
        %v489 = vadd.f32 %v385, %v488
        %v490 = vpop.f32.mrb[0].mxu0
        %491 = vdwg.mxu0
        %v492 = vmax.f32 %v462, 0.0
        %v493 = vmax.f32 %v465, 0.0
        %v494 = vmax.f32 %v470, 0.0
        %v495 = vmax.f32 %v473, 0.0
        %v496 = vmax.f32 %v478, 0.0
        %v497 = vmax.f32 %v481, 0.0
        %v498 = vmax.f32 %v486, 0.0
        %v499 = vmax.f32 %v489, 0.0
        %v500 = vpack.c.bf16 %v493, %v492
        %v501 = vpack.c.bf16 %v495, %v494
        %v502 = vpack.c.bf16 %v497, %v496
        %v503 = vpack.c.bf16 %v499, %v498
        %v504 = vld [vmem:[%s3] sm:$0xf]
        %v505 = vld [vmem:[%s3 + $0x4] sm:$0xf]
        %v506 = vld [vmem:[%s3 + $0x8] sm:$0xf]
        %v507 = vld [vmem:[%s3 + $0xc] sm:$0xf]
        %v508 = vld [vmem:[%s3 + $0x10] sm:$0xf]
        %v509 = vld [vmem:[%s3 + $0x14] sm:$0xf]
        %v510 = vld [vmem:[%s3 + $0x18] sm:$0xf]
        %v511 = vld [vmem:[%s3 + $0x1c] sm:$0xf]
        %v512 = vld [vmem:[%s3 + $0x20] sm:$0xf]
        %v513 = vld [vmem:[%s3 + $0x24] sm:$0xf]
        %v514 = vld [vmem:[%s3 + $0x28] sm:$0xf]
        %v515 = vld [vmem:[%s3 + $0x2c] sm:$0xf]
        %v516 = vld [vmem:[%s3 + $0x30] sm:$0xf]
        %v517 = vld [vmem:[%s3 + $0x34] sm:$0xf]
        %v518 = vld [vmem:[%s3 + $0x38] sm:$0xf]
        %v519 = vld [vmem:[%s3 + $0x3c] sm:$0xf]
        %v520 = vld [vmem:[%s4] sm:$0xff]
        %v521 = vld [vmem:[%s4 + $0x8] sm:$0xff]
        %v522 = vld [vmem:[%s4 + $0x10] sm:$0xff]
        %v523 = vld [vmem:[%s4 + $0x18] sm:$0xff]
        %v524 = vld [vmem:[%s4 + $0x20] sm:$0xff]
        %v525 = vld [vmem:[%s4 + $0x28] sm:$0xff]
        %v526 = vld [vmem:[%s4 + $0x30] sm:$0xff]
        %v527 = vld [vmem:[%s4 + $0x38] sm:$0xff]
        %v528 = vld [vmem:[%s4 + $0x40] sm:$0xff]
        %v529 = vld [vmem:[%s4 + $0x48] sm:$0xff]
        %v530 = vld [vmem:[%s4 + $0x50] sm:$0xff]
        %v531 = vld [vmem:[%s4 + $0x58] sm:$0xff]
        %v532 = vld [vmem:[%s4 + $0x60] sm:$0xff]
        %v533 = vld [vmem:[%s4 + $0x68] sm:$0xff]
        %v534 = vld [vmem:[%s4 + $0x70] sm:$0xff]
        %v535 = vld [vmem:[%s4 + $0x78] sm:$0xff]
        %537 = vset.pattern.permute.xlu0 0
        %538 = vperm.xlu0 %537, %v520
        %v539 = vpop.permute.xlu0 %538
        %542 = vset.pattern.permute.xlu0 0
        %543 = vperm.xlu0 %542, %v521
        %v544 = vpop.permute.xlu0 %543
        %547 = vset.pattern.permute.xlu0 0
        %548 = vperm.xlu0 %547, %v522
        %v549 = vpop.permute.xlu0 %548
        %552 = vset.pattern.permute.xlu0 0
        %553 = vperm.xlu0 %552, %v523
        %v554 = vpop.permute.xlu0 %553
        %557 = vset.pattern.permute.xlu0 0
        %558 = vperm.xlu0 %557, %v524
        %v559 = vpop.permute.xlu0 %558
        %562 = vset.pattern.permute.xlu0 0
        %563 = vperm.xlu0 %562, %v525
        %v564 = vpop.permute.xlu0 %563
        %567 = vset.pattern.permute.xlu0 0
        %568 = vperm.xlu0 %567, %v526
        %v569 = vpop.permute.xlu0 %568
        %572 = vset.pattern.permute.xlu0 0
        %573 = vperm.xlu0 %572, %v527
        %v574 = vpop.permute.xlu0 %573
        %577 = vset.pattern.permute.xlu0 0
        %578 = vperm.xlu0 %577, %v528
        %v579 = vpop.permute.xlu0 %578
        %582 = vset.pattern.permute.xlu0 0
        %583 = vperm.xlu0 %582, %v529
        %v584 = vpop.permute.xlu0 %583
        %587 = vset.pattern.permute.xlu0 0
        %588 = vperm.xlu0 %587, %v530
        %v589 = vpop.permute.xlu0 %588
        %592 = vset.pattern.permute.xlu0 0
        %593 = vperm.xlu0 %592, %v531
        %v594 = vpop.permute.xlu0 %593
        %597 = vset.pattern.permute.xlu0 0
        %598 = vperm.xlu0 %597, %v532
        %v599 = vpop.permute.xlu0 %598
        %602 = vset.pattern.permute.xlu0 0
        %603 = vperm.xlu0 %602, %v533
        %v604 = vpop.permute.xlu0 %603
        %607 = vset.pattern.permute.xlu0 0
        %608 = vperm.xlu0 %607, %v534
        %v609 = vpop.permute.xlu0 %608
        %612 = vset.pattern.permute.xlu0 0
        %613 = vperm.xlu0 %612, %v535
        %v614 = vpop.permute.xlu0 %613
        %v632 = vunpack.c.l.b16 %v504
        %v633 = vunpack.c.l.b16 %v505
        %v634 = vunpack.c.l.b16 %v506
        %v635 = vunpack.c.l.b16 %v507
        %v636 = vunpack.c.l.b16 %v508
        %v637 = vunpack.c.l.b16 %v509
        %v638 = vunpack.c.l.b16 %v510
        %v639 = vunpack.c.l.b16 %v511
        %v640 = vunpack.c.l.b16 %v512
        %v641 = vunpack.c.l.b16 %v513
        %v642 = vunpack.c.l.b16 %v514
        %v643 = vunpack.c.l.b16 %v515
        %v644 = vunpack.c.l.b16 %v516
        %v645 = vunpack.c.l.b16 %v517
        %v646 = vunpack.c.l.b16 %v518
        %v647 = vunpack.c.l.b16 %v519
        %v648 = vpack.c.b16 %v633, %v632
        %v649 = vpack.c.b16 %v635, %v634
        %v650 = vpack.c.b16 %v637, %v636
        %v651 = vpack.c.b16 %v639, %v638
        %v652 = vpack.c.b16 %v641, %v640
        %v653 = vpack.c.b16 %v643, %v642
        %v654 = vpack.c.b16 %v645, %v644
        %v655 = vpack.c.b16 %v647, %v646
        %vm656 = vcmask 523264
        %v658 = vsel %vm656, %v648, 0
        %v661 = vsel %vm656, %v649, 0
        %v664 = vsel %vm656, %v650, 0
        %v667 = vsel %vm656, %v651, 0
        %v670 = vsel %vm656, %v652, 0
        %v673 = vsel %vm656, %v653, 0
        %v676 = vsel %vm656, %v654, 0
        %v679 = vsel %vm656, %v655, 0
        %681 = vmatprep.subr.bf16.mxu0 0
        %682 = vmatpush1.bf16.msra.mxu0 %v500
        %683 = vmatprep.subr.bf16.mxu0 0
        %684 = vmatpush1.bf16.msra.mxu0 %v501
        %685 = vmatprep.subr.bf16.mxu0 0
        %686 = vmatpush1.bf16.msra.mxu0 %v502
        %687 = vmatprep.subr.bf16.mxu0 0
        %688 = vmatpush1.bf16.msra.mxu0 %v503
        %689 = vmatprep.subr.bf16.mxu0 0
        %690 = vmatpush1.bf16.msra.mxu0 0
        %691 = vmatprep.subr.bf16.mxu0 0
        %692 = vmatpush1.bf16.msra.mxu0 0
        %693 = vmatprep.subr.bf16.mxu0 0
        %694 = vmatpush1.bf16.msra.mxu0 0
        %695 = vmatprep.subr.bf16.mxu0 0
        %696 = vmatpush1.bf16.msra.mxu0 0
        %697 = vmatprep.subr.bf16.mxu0 0
        %698 = vmatpush1.bf16.msra.mxu0 0
        %699 = vmatprep.subr.bf16.mxu0 0
        %700 = vmatpush1.bf16.msra.mxu0 0
        %701 = vmatprep.subr.bf16.mxu0 0
        %702 = vmatpush1.bf16.msra.mxu0 0
        %703 = vmatprep.subr.bf16.mxu0 0
        %704 = vmatpush1.bf16.msra.mxu0 0
        %705 = vmatprep.subr.bf16.mxu0 0
        %706 = vmatpush1.bf16.msra.mxu0 0
        %707 = vmatprep.subr.bf16.mxu0 0
        %708 = vmatpush1.bf16.msra.mxu0 0
        %709 = vmatprep.subr.bf16.mxu0 0
        %710 = vmatpush1.bf16.msra.mxu0 0
        %711 = vmatprep.subr.bf16.mxu0 0
        %712 = vmatpush1.bf16.msra.mxu0 0
        %713 = vmatprep.mubr.bf16.mxu0 0
        %714 = vmatmul.mubr.bf16.gmra.mrb[0].mxu0 %v658
        %v715 = vpop.f32.mrb[0].mxu0
        %v716 = vadd.f32 %v539, %v715
        %v717 = vpop.f32.mrb[0].mxu0
        %v718 = vpop.f32.mrb[0].mxu0
        %v719 = vadd.f32 %v544, %v718
        %v720 = vpop.f32.mrb[0].mxu0
        %721 = vmatprep.mubr.bf16.mxu0 0
        %722 = vmatmul.mubr.bf16.gmra.mrb[0].mxu0 %v661
        %v723 = vpop.f32.mrb[0].mxu0
        %v724 = vadd.f32 %v549, %v723
        %v725 = vpop.f32.mrb[0].mxu0
        %v726 = vpop.f32.mrb[0].mxu0
        %v727 = vadd.f32 %v554, %v726
        %v728 = vpop.f32.mrb[0].mxu0
        %729 = vmatprep.mubr.bf16.mxu0 0
        %730 = vmatmul.mubr.bf16.gmra.mrb[0].mxu0 %v664
        %v731 = vpop.f32.mrb[0].mxu0
        %v732 = vadd.f32 %v559, %v731
        %v733 = vpop.f32.mrb[0].mxu0
        %v734 = vpop.f32.mrb[0].mxu0
        %v735 = vadd.f32 %v564, %v734
        %v736 = vpop.f32.mrb[0].mxu0
        %737 = vmatprep.mubr.bf16.mxu0 0
        %738 = vmatmul.mubr.bf16.gmra.mrb[0].mxu0 %v667
        %v739 = vpop.f32.mrb[0].mxu0
        %v740 = vadd.f32 %v569, %v739
        %v741 = vpop.f32.mrb[0].mxu0
        %v742 = vpop.f32.mrb[0].mxu0
        %v743 = vadd.f32 %v574, %v742
        %v744 = vpop.f32.mrb[0].mxu0
        %745 = vmatprep.mubr.bf16.mxu0 0
        %746 = vmatmul.mubr.bf16.gmra.mrb[0].mxu0 %v670
        %v747 = vpop.f32.mrb[0].mxu0
        %v748 = vadd.f32 %v579, %v747
        %v749 = vpop.f32.mrb[0].mxu0
        %v750 = vpop.f32.mrb[0].mxu0
        %v751 = vadd.f32 %v584, %v750
        %v752 = vpop.f32.mrb[0].mxu0
        %753 = vmatprep.mubr.bf16.mxu0 0
        %754 = vmatmul.mubr.bf16.gmra.mrb[0].mxu0 %v673
        %v755 = vpop.f32.mrb[0].mxu0
        %v756 = vadd.f32 %v589, %v755
        %v757 = vpop.f32.mrb[0].mxu0
        %v758 = vpop.f32.mrb[0].mxu0
        %v759 = vadd.f32 %v594, %v758
        %v760 = vpop.f32.mrb[0].mxu0
        %761 = vmatprep.mubr.bf16.mxu0 0
        %762 = vmatmul.mubr.bf16.gmra.mrb[0].mxu0 %v676
        %v763 = vpop.f32.mrb[0].mxu0
        %v764 = vadd.f32 %v599, %v763
        %v765 = vpop.f32.mrb[0].mxu0
        %v766 = vpop.f32.mrb[0].mxu0
        %v767 = vadd.f32 %v604, %v766
        %v768 = vpop.f32.mrb[0].mxu0
        %769 = vmatprep.mubr.bf16.mxu0 0
        %770 = vmatmul.mubr.bf16.gmra.mrb[0].mxu0 %v679
        %v771 = vpop.f32.mrb[0].mxu0
        %v772 = vadd.f32 %v609, %v771
        %v773 = vpop.f32.mrb[0].mxu0
        %v774 = vpop.f32.mrb[0].mxu0
        %v775 = vadd.f32 %v614, %v774
        %v776 = vpop.f32.mrb[0].mxu0
        %777 = vdwg.mxu0
        %v778 = vmax.f32 %v716, 0.0
        %v779 = vmax.f32 %v719, 0.0
        %v780 = vmax.f32 %v724, 0.0
        %v781 = vmax.f32 %v727, 0.0
        %v782 = vmax.f32 %v732, 0.0
        %v783 = vmax.f32 %v735, 0.0
        %v784 = vmax.f32 %v740, 0.0
        %v785 = vmax.f32 %v743, 0.0
        %v786 = vmax.f32 %v748, 0.0
        %v787 = vmax.f32 %v751, 0.0
        %v788 = vmax.f32 %v756, 0.0
        %v789 = vmax.f32 %v759, 0.0
        %v790 = vmax.f32 %v764, 0.0
        %v791 = vmax.f32 %v767, 0.0
        %v792 = vmax.f32 %v772, 0.0
        %v793 = vmax.f32 %v775, 0.0
        %v794 = vpack.c.bf16 %v779, %v778
        %v795 = vpack.c.bf16 %v781, %v780
        %v796 = vpack.c.bf16 %v783, %v782
        %v797 = vpack.c.bf16 %v785, %v784
        %v798 = vpack.c.bf16 %v787, %v786
        %v799 = vpack.c.bf16 %v789, %v788
        %v800 = vpack.c.bf16 %v791, %v790
        %v801 = vpack.c.bf16 %v793, %v792
        %v802 = vld [vmem:[%s5] sm:$0xf]
        %v803 = vld [vmem:[%s5 + $0x4] sm:$0xf]
        %v804 = vld [vmem:[%s5 + $0x8] sm:$0xf]
        %v805 = vld [vmem:[%s5 + $0xc] sm:$0xf]
        %v806 = vld [vmem:[%s5 + $0x10] sm:$0xf]
        %v807 = vld [vmem:[%s5 + $0x14] sm:$0xf]
        %v808 = vld [vmem:[%s5 + $0x18] sm:$0xf]
        %v809 = vld [vmem:[%s5 + $0x1c] sm:$0xf]
        %v810 = vld [vmem:[%s6] sm:$0xff]
        %v811 = vld [vmem:[%s6 + $0x8] sm:$0xff]
        %v812 = vld [vmem:[%s6 + $0x10] sm:$0xff]
        %v813 = vld [vmem:[%s6 + $0x18] sm:$0xff]
        %v814 = vld [vmem:[%s6 + $0x20] sm:$0xff]
        %v815 = vld [vmem:[%s6 + $0x28] sm:$0xff]
        %v816 = vld [vmem:[%s6 + $0x30] sm:$0xff]
        %v817 = vld [vmem:[%s6 + $0x38] sm:$0xff]
        %819 = vset.pattern.permute.xlu0 0
        %820 = vperm.xlu0 %819, %v810
        %v821 = vpop.permute.xlu0 %820
        %824 = vset.pattern.permute.xlu0 0
        %825 = vperm.xlu0 %824, %v811
        %v826 = vpop.permute.xlu0 %825
        %829 = vset.pattern.permute.xlu0 0
        %830 = vperm.xlu0 %829, %v812
        %v831 = vpop.permute.xlu0 %830
        %834 = vset.pattern.permute.xlu0 0
        %835 = vperm.xlu0 %834, %v813
        %v836 = vpop.permute.xlu0 %835
        %839 = vset.pattern.permute.xlu0 0
        %840 = vperm.xlu0 %839, %v814
        %v841 = vpop.permute.xlu0 %840
        %844 = vset.pattern.permute.xlu0 0
        %845 = vperm.xlu0 %844, %v815
        %v846 = vpop.permute.xlu0 %845
        %849 = vset.pattern.permute.xlu0 0
        %850 = vperm.xlu0 %849, %v816
        %v851 = vpop.permute.xlu0 %850
        %854 = vset.pattern.permute.xlu0 0
        %855 = vperm.xlu0 %854, %v817
        %v856 = vpop.permute.xlu0 %855
        %v866 = vunpack.c.l.b16 %v802
        %v867 = vunpack.c.l.b16 %v803
        %v868 = vunpack.c.l.b16 %v804
        %v869 = vunpack.c.l.b16 %v805
        %v870 = vunpack.c.l.b16 %v806
        %v871 = vunpack.c.l.b16 %v807
        %v872 = vunpack.c.l.b16 %v808
        %v873 = vunpack.c.l.b16 %v809
        %v874 = vpack.c.b16 %v867, %v866
        %v875 = vpack.c.b16 %v869, %v868
        %v876 = vpack.c.b16 %v871, %v870
        %v877 = vpack.c.b16 %v873, %v872
        %882 = vmatprep.subr.bf16.mxu0 0
        %883 = vmatpush1.bf16.msra.mxu0 %v794
        %884 = vmatprep.subr.bf16.mxu0 0
        %885 = vmatpush1.bf16.msra.mxu0 %v795
        %886 = vmatprep.subr.bf16.mxu0 0
        %887 = vmatpush1.bf16.msra.mxu0 %v796
        %888 = vmatprep.subr.bf16.mxu0 0
        %889 = vmatpush1.bf16.msra.mxu0 %v797
        %890 = vmatprep.subr.bf16.mxu0 0
        %891 = vmatpush1.bf16.msra.mxu0 %v798
        %892 = vmatprep.subr.bf16.mxu0 0
        %893 = vmatpush1.bf16.msra.mxu0 %v799
        %894 = vmatprep.subr.bf16.mxu0 0
        %895 = vmatpush1.bf16.msra.mxu0 %v800
        %896 = vmatprep.subr.bf16.mxu0 0
        %897 = vmatpush1.bf16.msra.mxu0 %v801
        %898 = vmatprep.subr.bf16.mxu0 0
        %899 = vmatpush1.bf16.msra.mxu0 0
        %900 = vmatprep.subr.bf16.mxu0 0
        %901 = vmatpush1.bf16.msra.mxu0 0
        %902 = vmatprep.subr.bf16.mxu0 0
        %903 = vmatpush1.bf16.msra.mxu0 0
        %904 = vmatprep.subr.bf16.mxu0 0
        %905 = vmatpush1.bf16.msra.mxu0 0
        %906 = vmatprep.subr.bf16.mxu0 0
        %907 = vmatpush1.bf16.msra.mxu0 0
        %908 = vmatprep.subr.bf16.mxu0 0
        %909 = vmatpush1.bf16.msra.mxu0 0
        %910 = vmatprep.subr.bf16.mxu0 0
        %911 = vmatpush1.bf16.msra.mxu0 0
        %912 = vmatprep.subr.bf16.mxu0 0
        %913 = vmatpush1.bf16.msra.mxu0 0
        %914 = vmatprep.mubr.bf16.mxu0 0
        %915 = vmatmul.mubr.bf16.gmra.mrb[0].mxu0 %v874
        %v916 = vpop.f32.mrb[0].mxu0
        %v917 = vadd.f32 %v821, %v916
        %v918 = vpop.f32.mrb[0].mxu0
        %v919 = vpop.f32.mrb[0].mxu0
        %v920 = vadd.f32 %v826, %v919
        %v921 = vpop.f32.mrb[0].mxu0
        %922 = vmatprep.mubr.bf16.mxu0 0
        %923 = vmatmul.mubr.bf16.gmra.mrb[0].mxu0 %v875
        %v924 = vpop.f32.mrb[0].mxu0
        %v925 = vadd.f32 %v831, %v924
        %v926 = vpop.f32.mrb[0].mxu0
        %v927 = vpop.f32.mrb[0].mxu0
        %v928 = vadd.f32 %v836, %v927
        %v929 = vpop.f32.mrb[0].mxu0
        %930 = vmatprep.mubr.bf16.mxu0 0
        %931 = vmatmul.mubr.bf16.gmra.mrb[0].mxu0 %v876
        %v932 = vpop.f32.mrb[0].mxu0
        %v933 = vadd.f32 %v841, %v932
        %v934 = vpop.f32.mrb[0].mxu0
        %v935 = vpop.f32.mrb[0].mxu0
        %v936 = vadd.f32 %v846, %v935
        %v937 = vpop.f32.mrb[0].mxu0
        %938 = vmatprep.mubr.bf16.mxu0 0
        %939 = vmatmul.mubr.bf16.gmra.mrb[0].mxu0 %v877
        %v940 = vpop.f32.mrb[0].mxu0
        %v941 = vadd.f32 %v851, %v940
        %v942 = vpop.f32.mrb[0].mxu0
        %v943 = vpop.f32.mrb[0].mxu0
        %v944 = vadd.f32 %v856, %v943
        %v945 = vpop.f32.mrb[0].mxu0
        %946 = vdwg.mxu0
        %v947 = vmax.f32 %v917, 0.0
        %v948 = vmax.f32 %v920, 0.0
        %v949 = vmax.f32 %v925, 0.0
        %v950 = vmax.f32 %v928, 0.0
        %v951 = vmax.f32 %v933, 0.0
        %v952 = vmax.f32 %v936, 0.0
        %v953 = vmax.f32 %v941, 0.0
        %v954 = vmax.f32 %v944, 0.0
        %v955 = vpack.c.bf16 %v948, %v947
        %v956 = vpack.c.bf16 %v950, %v949
        %v957 = vpack.c.bf16 %v952, %v951
        %v958 = vpack.c.bf16 %v954, %v953
        %v959 = vld [vmem:[%s7] sm:$0x3]
        %v960 = vld [vmem:[%s8] sm:$0x7]
        %962 = vset.pattern.permute.xlu0 0
        %963 = vperm.xlu0 %962, %v960
        %v964 = vpop.permute.xlu0 %963
        %v966 = vadd.f32 %v329, %v964
        %v968 = vsel %vm656, %v959, 0
        %970 = vmatprep.subr.bf16.mxu0 0
        %971 = vmatpush1.bf16.msra.mxu0 %v955
        %972 = vmatprep.subr.bf16.mxu0 0
        %973 = vmatpush1.bf16.msra.mxu0 %v956
        %974 = vmatprep.subr.bf16.mxu0 0
        %975 = vmatpush1.bf16.msra.mxu0 %v957
        %976 = vmatprep.subr.bf16.mxu0 0
        %977 = vmatpush1.bf16.msra.mxu0 %v958
        %978 = vmatprep.subr.bf16.mxu0 0
        %979 = vmatpush1.bf16.msra.mxu0 0
        %980 = vmatprep.subr.bf16.mxu0 0
        %981 = vmatpush1.bf16.msra.mxu0 0
        %982 = vmatprep.subr.bf16.mxu0 0
        %983 = vmatpush1.bf16.msra.mxu0 0
        %984 = vmatprep.subr.bf16.mxu0 0
        %985 = vmatpush1.bf16.msra.mxu0 0
        %986 = vmatprep.subr.bf16.mxu0 0
        %987 = vmatpush1.bf16.msra.mxu0 0
        %988 = vmatprep.subr.bf16.mxu0 0
        %989 = vmatpush1.bf16.msra.mxu0 0
        %990 = vmatprep.subr.bf16.mxu0 0
        %991 = vmatpush1.bf16.msra.mxu0 0
        %992 = vmatprep.subr.bf16.mxu0 0
        %993 = vmatpush1.bf16.msra.mxu0 0
        %994 = vmatprep.subr.bf16.mxu0 0
        %995 = vmatpush1.bf16.msra.mxu0 0
        %996 = vmatprep.subr.bf16.mxu0 0
        %997 = vmatpush1.bf16.msra.mxu0 0
        %998 = vmatprep.subr.bf16.mxu0 0
        %999 = vmatpush1.bf16.msra.mxu0 0
        %1000 = vmatprep.subr.bf16.mxu0 0
        %1001 = vmatpush1.bf16.msra.mxu0 0
        %1002 = vmatprep.mubr.bf16.mxu0 0
        %1003 = vmatmul.mubr.bf16.gmra.mrb[0].mxu0 %v968
        %v1004 = vpop.f32.mrb[0].mxu0
        %v1005 = vadd.f32 %v966, %v1004
        %v1006 = vpop.f32.mrb[0].mxu0
        %v1007 = vpop.f32.mrb[0].mxu0
        %v1008 = vpop.f32.mrb[0].mxu0
        %1009 = vdwg.mxu0
        %vm1010 = vcmask 1042432
        %v1011 = vsel %vm1010, %v1005, -inf
        %v1012 = vrot.slane %v1011, 4
        %v1013 = vmax.f32 %v1011, %v1012
        %v1014 = vrot.slane %v1013, 2
        %v1015 = vmax.f32 %v1013, %v1014
        %v1016 = vrot.slane %v1015, 1
        %v1017 = vmax.f32 %v1015, %v1016
        %v1018 = vsub.f32 %v1005, %v1017
        %v1019 = vmul.f32 %v1018, 1.442695
        %v1020 = vpow.pop %v1019
        %v1021 = vsel %vm1010, %v1020, 0.0
        %v1022 = vrot.slane %v1021, 4
        %v1023 = vadd.f32 %v1021, %v1022
        %v1024 = vrot.slane %v1023, 2
        %v1025 = vadd.f32 %v1023, %v1024
        %v1026 = vrot.slane %v1025, 1
        %v1027 = vadd.f32 %v1025, %v1026
        %v1028 = vrcp.pop %v1027
        %v1029 = vmul.f32 %v1020, %v1028
        %1030 = vst [vmem:[%s323] sm:$0x7] %v1029
        %s1031 = sand.u32 %s225, 1
        %s1032 = scalar_lea.sflag [#allocation3], %s1031
        %s1033 = sand.u32 %s225, 1
        %s1034 = smul.addr %s1033, 4
        %s1035 = scalar_lea.vmem [#allocation2], %s1034
        // Predicated region
        $region57: #{residual_color_cnn_cb.1} parent=55 // pred_check
          %p1036 = pneg %p235
        $region58: #{residual_color_cnn_cb.1} parent=55 // pred_check_branch
          %1038 = sbr.rel (%p1036) target = $region60
        $region59: #{residual_color_cnn_cb.1} parent=55 // pred_region
          %s1040 = ssub.s32 64, 64
          %1041 = vsyncadd %s1032, %s1040
          %s1042 = smul.addr %s23, 64
          %s1043 = scalar_lea.hbm %s9, %s1042
          %s1045 = sshll.u32 %s1035, 4
          %s1046 = int_to_ptr.vmem [resolvable:$true] %s1045
          %1048 = dma.vmem_to_hbm [thread:$0]  %s1046, 64, %s1043, %s1032
        $region60: #{residual_color_cnn_cb.1} parent=55 // pred_fallthru
          _
      $region56: #{residual_color_cnn_cb.1} parent=5 // pred_fallthru
        _
      %p1049 = scmp.le.s32.totalorder 2, %s18
      // Predicated region
      $region61: #{residual_color_cnn_cb.1} parent=5 // pred_check
        %p1050 = pneg %p1049
      $region62: #{residual_color_cnn_cb.1} parent=5 // pred_check_branch
        %1052 = sbr.rel (%p1050) target = $region64
      $region63: #{residual_color_cnn_cb.1} parent=5 // pred_region
        %s1053 = ssub.s32 %s18, 2
        // Predicated region
        $region65: #{residual_color_cnn_cb.1} parent=63 // pred_check
          %p1054 = pneg %p241
        $region66: #{residual_color_cnn_cb.1} parent=63 // pred_check_branch
          %1056 = sbr.rel (%p1054) target = $region68
        $region67: #{residual_color_cnn_cb.1} parent=63 // pred_region
          %s1057 = sand.u32 %s226, 1
          %s1058 = scalar_lea.sflag [#allocation3], %s1057
          %s1059 = sand.u32 %s226, 1
          %s1060 = smul.addr %s1059, 4
          %s1061 = scalar_lea.vmem [#allocation2], %s1060
          %1062 = dma.done %s1058, 64
        $region68: #{residual_color_cnn_cb.1} parent=63 // pred_fallthru
          _
      $region64: #{residual_color_cnn_cb.1} parent=5 // pred_fallthru
        _
    $region6: #{residual_color_cnn_cb.1} parent=1 // loop_footer
      %s22 = sadd.s32 1, %s18
    $region7: #{residual_color_cnn_cb.1} parent=1 // loop_footer_branch
      %17 = sbr.rel target = $region3
    $region8: #{residual_color_cnn_cb.1} parent=1 // loop_exit
      _
    %1063 = vsyncpa [#allocation3], 1
    %s1064 = scalar_lea.sflag [#allocation3], 1
    %1065 = vsyncpa %s1064, 1

</llo_original>
